<compile_context>
chip_gen: v7x
topology: tpu7x:2x2x1
jax: 0.10.0
libtpu: 0.0.40
codegen_flags: <defaults>
</compile_context>

<pallas_src>
import jax
import jax.numpy as jnp
from jax.experimental import pallas as pl
from jax.experimental.pallas import tpu as pltpu


# Comfortably under v7x's 64 MiB physical VMEM; well within v5e/v6e's 128 MiB.
_VMEM_LIMIT_BYTES = 48 * 1024 * 1024


# ----------------------------------------------------------------------------
# Helpers
# ----------------------------------------------------------------------------
def _round_up(x, m):
    return ((x + m - 1) // m) * m


def _plan_dim(dim, candidates):
    """Return (tile, padded_dim).

    Uses the FULL dim as the tile (legal block shape, zero padding) whenever it
    fits in the largest candidate; otherwise pads the dim to a 128 multiple and
    picks the largest candidate that divides it (128 always does).
    """
    if dim <= candidates[0]:
        return dim, dim
    pad = _round_up(dim, 128)
    for c in candidates:
        if pad % c == 0:
            return c, pad
    return 128, pad


def _maybe_split_for_two_cores(tm, tn, mp, np_):
    """Prefer >= 2 parallel output blocks so v7x's 2 TensorCores both work."""
    if (mp // tm) * (np_ // tn) >= 2:
        return tm, tn
    if tm >= 256 and tm % 16 == 0 and mp % (tm // 2) == 0:
        return tm // 2, tn        # tm//2 stays a multiple of 8
    if tn >= 256 and tn % 256 == 0 and np_ % (tn // 2) == 0:
        return tm, tn // 2        # tn//2 stays a multiple of 128 (lane-dense)
    return tm, tn


def _maybe_pad2d(a, rows, cols):
    r, c = a.shape
    if r == rows and c == cols:
        return a
    return jnp.pad(a, ((0, rows - r), (0, cols - c)))


# ----------------------------------------------------------------------------
# Pallas kernels
# ----------------------------------------------------------------------------
def _linear_kernel_acc(x_ref, w_ref, b_ref, o_ref, acc_ref):
    # Multi-K-step variant: f32 VMEM accumulator, bias/cast epilogue once.
    # x_ref: (tm, tk) bf16   w_ref: (tk, tn) bf16   b_ref: (1, tn) f32
    k = pl.program_id(2)

    @pl.when(k == 0)
    def _():
        acc_ref[...] = jnp.zeros_like(acc_ref)

    acc_ref[...] += jnp.dot(
        x_ref[...], w_ref[...], preferred_element_type=jnp.float32
    )

    @pl.when(k == pl.num_programs(2) - 1)
    def _():
        o_ref[...] = (acc_ref[...] + b_ref[...].astype(jnp.float32)).astype(
            o_ref.dtype
        )


def _linear_kernel_single(x_ref, w_ref, b_ref, o_ref):
    # Single-K-step variant: no scratch, dot + bias straight into the output.
    acc = jnp.dot(x_ref[...], w_ref[...], preferred_element_type=jnp.float32)
    o_ref[...] = (acc + b_ref[...].astype(jnp.float32)).astype(o_ref.dtype)


def _allreduce_mean_kernel_inplace(g_ref, o_ref):
    # f32 gradients: accumulate directly in the VMEM-resident output tile.
    w = pl.program_id(2)
    nw = pl.num_programs(2)

    @pl.when(w == 0)
    def _():
        o_ref[...] = jnp.zeros_like(o_ref)

    o_ref[...] += g_ref[...]

    @pl.when(w == nw - 1)
    def _():
        o_ref[...] = o_ref[...] * (1.0 / nw)   # /world_size folded into finalize


def _allreduce_mean_kernel_scratch(g_ref, o_ref, acc_ref):
    # Low-precision gradients: keep an f32 scratch accumulator.
    w = pl.program_id(2)
    nw = pl.num_programs(2)

    @pl.when(w == 0)
    def _():
        acc_ref[...] = jnp.zeros_like(acc_ref)

    acc_ref[...] += g_ref[...].astype(jnp.float32)

    @pl.when(w == nw - 1)
    def _():
        o_ref[...] = (acc_ref[...] * (1.0 / nw)).astype(o_ref.dtype)


# ----------------------------------------------------------------------------
# Wrappers
# ----------------------------------------------------------------------------
def pallas_linear(x2d, w_t, bias, out_dtype=None):
    """y = x2d @ w_t + bias with a tiled, pipelined Pallas matmul.

    x2d: (M, K)   w_t: (K, N) (already transposed, ideally bf16)   bias: (N,)
    """
    M, K = x2d.shape
    K2, N = w_t.shape
    assert K == K2
    if out_dtype is None:
        out_dtype = x2d.dtype

    # Feed the MXU bf16 (f32 accumulation preserved): bf16 MXU rate on every
    # generation and half the activation/weight HBM bytes.
    if x2d.dtype == jnp.float32:
        x2d = x2d.astype(jnp.bfloat16)

    tm, Mp = _plan_dim(M, (512, 256, 128))
    tn, Np = _plan_dim(N, (512, 256, 128))
    tk, Kp = _plan_dim(K, (1024, 512, 256, 128))
    tm, tn = _maybe_split_for_two_cores(tm, tn, Mp, Np)

    # Padding only happens for oversized, unaligned dims (never for small or
    # 128-aligned shapes) -> no extra HBM pass in the common case.
    xp = _maybe_pad2d(x2d, Mp, Kp)
    wp = _maybe_pad2d(w_t, Kp, Np)
    bp = _maybe_pad2d(bias.reshape(1, -1), 1, Np)

    n_k = Kp // tk
    grid = (Mp // tm, Np // tn, n_k)

    cost = pl.CostEstimate(
        flops=2 * Mp * Np * Kp,
        transcendentals=0,
        bytes_accessed=(
            Mp * Kp * jnp.dtype(xp.dtype).itemsize
            + Kp * Np * jnp.dtype(wp.dtype).itemsize
            + Np * jnp.dtype(bp.dtype).itemsize
            + Mp * Np * jnp.dtype(out_dtype).itemsize
        ),
    )

    common = dict(
        out_shape=jax.ShapeDtypeStruct((Mp, Np), out_dtype),
        grid=grid,
        in_specs=[
            pl.BlockSpec((tm, tk), lambda i, j, k: (i, k)),
            pl.BlockSpec((tk, tn), lambda i, j, k: (k, j)),
            pl.BlockSpec((1, tn), lambda i, j, k: (0, j)),
        ],
        out_specs=pl.BlockSpec((tm, tn), lambda i, j, k: (i, j)),
        compiler_params=pltpu.CompilerParams(
            dimension_semantics=("parallel", "parallel", "arbitrary"),
            vmem_limit_bytes=_VMEM_LIMIT_BYTES,
        ),
        cost_estimate=cost,
    )

    if n_k == 1:
        out_p = pl.pallas_call(_linear_kernel_single, **common)(xp, wp, bp)
    else:
        out_p = pl.pallas_call(
            _linear_kernel_acc,
            scratch_shapes=[pltpu.VMEM((tm, tn), jnp.float32)],
            **common,
        )(xp, wp, bp)

    if Mp == M and Np == N:
        return out_p
    return out_p[:M, :N]


def pallas_allreduce_mean(grads_stacked):
    """Simulated dist.all_reduce(SUM)/world_size over the leading world axis.

    grads_stacked: (world_size, O, H) -> (O, H), same dtype as the input.
    """
    W, O, H = grads_stacked.shape
    out_dtype = grads_stacked.dtype

    tm, Op = _plan_dim(O, (1024, 512, 256, 128))
    tn, Hp = _plan_dim(H, (1024, 512, 256, 128))
    tm, tn = _maybe_split_for_two_cores(tm, tn, Op, Hp)

    if Op != O or Hp != H:
        g = jnp.pad(grads_stacked, ((0, 0), (0, Op - O), (0, Hp - H)))
    else:
        g = grads_stacked

    grid = (Op // tm, Hp // tn, W)  # world axis LAST (reduction)
    # TODO(synk): for large world_size consider pipeline_mode=pl.Buffered(3) on
    # the gradient spec to deepen DMA overlap of this pure HBM stream.
    in_specs = [
        pl.BlockSpec((pl.Squeezed(), tm, tn), lambda i, j, w: (w, i, j)),
    ]
    out_spec = pl.BlockSpec((tm, tn), lambda i, j, w: (i, j))
    cparams = pltpu.CompilerParams(
        dimension_semantics=("parallel", "parallel", "arbitrary"),
        vmem_limit_bytes=_VMEM_LIMIT_BYTES,
    )

    if out_dtype == jnp.float32:
        out_p = pl.pallas_call(
            _allreduce_mean_kernel_inplace,
            out_shape=jax.ShapeDtypeStruct((Op, Hp), out_dtype),
            grid=grid,
            in_specs=in_specs,
            out_specs=out_spec,
            compiler_params=cparams,
        )(g)
    else:
        out_p = pl.pallas_call(
            _allreduce_mean_kernel_scratch,
            out_shape=jax.ShapeDtypeStruct((Op, Hp), out_dtype),
            grid=grid,
            in_specs=in_specs,
            out_specs=out_spec,
            scratch_shapes=[pltpu.VMEM((tm, tn), jnp.float32)],
            compiler_params=cparams,
        )(g)

    if Op == O and Hp == H:
        return out_p
    return out_p[:O, :H]


class DistributedDataParallelPallas:
    """JAX/Pallas analogue of the PyTorch DistributedDataParallel wrapper."""

    def __init__(self, weight, bias, world_size=2, src_rank=0):
        assert world_size > 1, (
            "Data parallel size must be at least 2 to use DataDistributedParallel."
        )
        # PyTorch nn.Linear stores (O, H); pre-transpose AND cast to bf16 ONCE
        # so forward never pays a per-call transpose or widening HBM stream.
        self.weight = jnp.asarray(weight)                       # (O, H) master
        self.w_t = jnp.asarray(weight).T.astype(jnp.bfloat16)   # (H, O)
        self.bias = jnp.asarray(bias)                           # (O,) f32 epilogue
        self.world_size = world_size
        self.src_rank = src_rank

    # forward(*inputs, **kwargs) -> self.module(*inputs, **kwargs)
    def forward(self, x):
        B, S, H = x.shape
        x2d = x.reshape(B * S, H)
        y2d = pallas_linear(x2d, self.w_t, self.bias, out_dtype=x.dtype)
        return y2d.reshape(B, S, -1)

    def broadcast_params(self):
        # TODO(synk): true cross-chip broadcast needs pltpu.make_async_remote_copy
        # over a device mesh; on a single device params are already replicated.
        return self.weight, self.bias

    def allreduce_gradients(self, per_rank_weight_grads):
        # per_rank_weight_grads: (world_size, O, H)
        return pallas_allreduce_mean(per_rank_weight_grads)


# ----------------------------------------------------------------------------
# Main
# ----------------------------------------------------------------------------
if __name__ == "__main__":
    key = jax.random.PRNGKey(0)
    kx, kw, kb, kg, kx2, kw2 = jax.random.split(key, 6)

    B, S, H, O = 2, 8, 32, 32
    WORLD = 2

    x = jax.random.normal(kx, (B, S, H), dtype=jnp.float32)
    weight = jax.random.normal(kw, (O, H), dtype=jnp.float32) * 0.1
    bias = jax.random.normal(kb, (O,), dtype=jnp.float32) * 0.1

    ddp = DistributedDataParallelPallas(weight, bias, world_size=WORLD)

    # Forward (== wrapped module forward); bf16 MXU inputs, f32 accumulation.
    y = jax.block_until_ready(ddp.forward(x))
    y_ref = x.reshape(B * S, H) @ weight.T + bias
    assert jnp.allclose(y.reshape(B * S, O), y_ref, atol=2e-2, rtol=2e-2)

    # Exercise the multi-K-step accumulator path (K > largest tile candidate).
    M2, K2, O2 = 8, 2048, 16
    x2 = jax.random.normal(kx2, (M2, K2), dtype=jnp.float32)
    w2 = jax.random.normal(kw2, (O2, K2), dtype=jnp.float32) * 0.05
    b2 = jnp.zeros((O2,), dtype=jnp.float32)
    y2 = jax.block_until_ready(
        pallas_linear(x2, jnp.asarray(w2).T.astype(jnp.bfloat16), b2,
                      out_dtype=jnp.float32)
    )
    y2_ref = x2 @ w2.T
    rel = jnp.linalg.norm(y2 - y2_ref) / jnp.linalg.norm(y2_ref)
    assert rel < 2e-2, rel

    # Simulated allreduce_gradients: sum over world axis then / world_size.
    fake_grads = jax.random.normal(kg, (WORLD, O, H), dtype=jnp.float32)
    g_avg = jax.block_until_ready(ddp.allreduce_gradients(fake_grads))
    g_ref = fake_grads.sum(axis=0) / WORLD
    assert jnp.allclose(g_avg, g_ref, atol=1e-5, rtol=1e-5)

    print("KERNEL_OK")
</pallas_src>

<mosaic_0001>
module attributes {stable_mosaic.version = 11 : i64} {
  func.func @_linear_kernel_single(%arg0: i32, %arg1: i32, %arg2: i32, %arg3: memref<16x32xbf16, #tpu.memory_space<vmem>>, %arg4: memref<32x32xbf16, #tpu.memory_space<vmem>>, %arg5: memref<1x32xf32, #tpu.memory_space<vmem>>, %arg6: memref<16x32xf32, #tpu.memory_space<vmem>>) attributes {dimension_semantics = [#tpu.dimension_semantics<parallel>, #tpu.dimension_semantics<parallel>, #tpu.dimension_semantics<arbitrary>], iteration_bounds = array<i64: 1, 1, 1>, scalar_prefetch = 0 : i64, scratch_operands = 0 : i64, tpu.core_type = #tpu.core_type<tc>, window_params = [{transform_indices = @transform_0, window_bounds = array<i64: 16, 32>}, {transform_indices = @transform_1, window_bounds = array<i64: 32, 32>}, {transform_indices = @transform_2, window_bounds = array<i64: 1, 32>}, {transform_indices = @transform_3, window_bounds = array<i64: 16, 32>}]} {
    %c0 = arith.constant 0 : index
    %c0_0 = arith.constant 0 : index
    %0 = vector.load %arg3[%c0, %c0_0] : memref<16x32xbf16, #tpu.memory_space<vmem>>, vector<16x32xbf16>
    %c0_1 = arith.constant 0 : index
    %c0_2 = arith.constant 0 : index
    %1 = vector.load %arg4[%c0_1, %c0_2] : memref<32x32xbf16, #tpu.memory_space<vmem>>, vector<32x32xbf16>
    %cst = arith.constant dense<0.000000e+00> : vector<16x32xf32>
    %2 = tpu.matmul %0, %1, %cst {dimension_numbers = #tpu.dot_dimension_numbers<[1], [0], [0], [1], [0, 0, 1, 1], [], []>} : vector<16x32xbf16>, vector<32x32xbf16>, vector<16x32xf32> -> vector<16x32xf32>
    %c0_3 = arith.constant 0 : index
    %c0_4 = arith.constant 0 : index
    %3 = vector.load %arg5[%c0_3, %c0_4] : memref<1x32xf32, #tpu.memory_space<vmem>>, vector<1x32xf32>
    %4 = vector.broadcast %3 : vector<1x32xf32> to vector<16x32xf32>
    %5 = arith.addf %2, %4 : vector<16x32xf32>
    %c0_5 = arith.constant 0 : index
    %c0_6 = arith.constant 0 : index
    %6 = vector.load %arg6[%c0_5, %c0_6] : memref<16x32xf32, #tpu.memory_space<vmem>>, vector<16x32xf32>
    tpu.vector_store %arg6[%c0_5, %c0_6], %5 {strides = array<i32>} : memref<16x32xf32, #tpu.memory_space<vmem>>, vector<16x32xf32>,
    return
  }
  func.func @transform_0(%arg0: i32, %arg1: i32, %arg2: i32) -> (i32, i32) {
    %c0_i32 = arith.constant 0 : i32
    return %arg0, %arg2 : i32, i32
  }
  func.func @transform_1(%arg0: i32, %arg1: i32, %arg2: i32) -> (i32, i32) {
    %c0_i32 = arith.constant 0 : i32
    return %arg2, %arg1 : i32, i32
  }
  func.func @transform_2(%arg0: i32, %arg1: i32, %arg2: i32) -> (i32, i32) {
    %c0_i32 = arith.constant 0 : i32
    %c0_i32_0 = arith.constant 0 : i32
    return %c0_i32, %arg1 : i32, i32
  }
  func.func @transform_3(%arg0: i32, %arg1: i32, %arg2: i32) -> (i32, i32) {
    %c0_i32 = arith.constant 0 : i32
    return %arg0, %arg1 : i32, i32
  }
}

</mosaic_0001>

<llo_original>
// kernel: tpu_custom_call.1
$region0: #{tpu_custom_call.1}
  #allocation0 [shape = 'u32[]', space=smem, size = 0x4, offset = 0x4, fixed_abs, tag = 'smem constant byte address 0x4 - core index']
  #allocation1 [shape = 'u32[144,128]{1,0:T(1,128)}', space=vmem, size = 0x12000, scoped, tag = 'internal scratch']
  %s0 = inlined_call_operand.hbm [shape: bf16[16,32], index: 0, kind: input, shape index: {}]
  %s1 = inlined_call_operand.hbm [shape: bf16[32,32], index: 1, kind: input, shape index: {}]
  %s2 = inlined_call_operand.vmem [shape: f32[1,32], index: 2, kind: input, shape index: {}]
  %s3 = inlined_call_operand.hbm [shape: f32[16,32], index: 3, kind: output, shape index: {}]
  %s4 = sld [smem:[#allocation0]]
  $region30: #{tpu_custom_call.1} parent=0
    _
  %s6 = ssub.s32 1, %s4
  %s7 = scalar_select 0, %s6, %s4
  $region1: #{tpu_custom_call.1} parent=0
    #allocation2 [shape = 'u8[4096]{0}', space=vmem, size = 0x1000, scoped, tag = 'input window, operand 0, single buffered']
    #allocation3 [shape = 's32[1]{0}', space=sflag, size = 0x4, scoped, tag = 'scoped memory for tpu_custom_call.1']
    #allocation4 [shape = 's32[1]{0}', space=sflag, size = 0x4, scoped, tag = 'scoped memory for tpu_custom_call.1']
    #allocation5 [shape = 'u8[8192]{0}', space=vmem, size = 0x2000, scoped, tag = 'input window, operand 1, single buffered']
    #allocation6 [shape = 's32[1]{0}', space=sflag, size = 0x4, scoped, tag = 'scoped memory for tpu_custom_call.1']
    #allocation7 [shape = 'u8[8192]{0}', space=vmem, size = 0x2000, scoped, tag = 'output window, operand 0, single buffered']
    %8 = vsyncpa [#allocation3], 0
    %9 = vsyncpa [#allocation6], 0
    %10 = vsyncpa [#allocation4], 0
    // Predicated region
    $region2: #{tpu_custom_call.1} parent=1 // pred_check
      _
    $region3: #{tpu_custom_call.1} parent=1 // pred_check_branch
      %12 = sbr.rel (0) target = $region5
    $region4: #{tpu_custom_call.1} parent=1 // pred_region
      %s14 = ssub.s32 128, 128
      %15 = vsyncadd [#allocation3], %s14
      %s16 = sshll.u32 [#allocation2], 4
      %s17 = int_to_ptr.vmem [resolvable:$true] %s16
      %22 = dma.hbm_to_vmem [thread:$0]  %s0, 128, %s17, [#allocation3], 64, 64, 4
    $region5: #{tpu_custom_call.1} parent=1 // pred_fallthru
      _
    // Predicated region
    $region6: #{tpu_custom_call.1} parent=1 // pred_check
      _
    $region7: #{tpu_custom_call.1} parent=1 // pred_check_branch
      %24 = sbr.rel (0) target = $region9
    $region8: #{tpu_custom_call.1} parent=1 // pred_region
      %s26 = ssub.s32 256, 256
      %27 = vsyncadd [#allocation6], %s26
      %s28 = sshll.u32 [#allocation5], 4
      %s29 = int_to_ptr.vmem [resolvable:$true] %s28
      %34 = dma.hbm_to_vmem [thread:$0]  %s1, 256, %s29, [#allocation6], 64, 64, 4
    $region9: #{tpu_custom_call.1} parent=1 // pred_fallthru
      _
    // Predicated region
    $region10: #{tpu_custom_call.1} parent=1 // pred_check
      _
    $region11: #{tpu_custom_call.1} parent=1 // pred_check_branch
      %36 = sbr.rel (0) target = $region13
    $region12: #{tpu_custom_call.1} parent=1 // pred_region
      _
    $region13: #{tpu_custom_call.1} parent=1 // pred_fallthru
      _
    // Predicated region
    $region14: #{tpu_custom_call.1} parent=1 // pred_check
      _
    $region15: #{tpu_custom_call.1} parent=1 // pred_check_branch
      %38 = sbr.rel (0) target = $region17
    $region16: #{tpu_custom_call.1} parent=1 // pred_region
      %39 = dma.done [#allocation3], 128
    $region17: #{tpu_custom_call.1} parent=1 // pred_fallthru
      _
    // Predicated region
    $region18: #{tpu_custom_call.1} parent=1 // pred_check
      _
    $region19: #{tpu_custom_call.1} parent=1 // pred_check_branch
      %41 = sbr.rel (0) target = $region21
    $region20: #{tpu_custom_call.1} parent=1 // pred_region
      %42 = dma.done [#allocation6], 256
    $region21: #{tpu_custom_call.1} parent=1 // pred_fallthru
      _
    %v44 = vld [vmem:[#allocation2] sm:$0xf]
    %v45 = vld [vmem:[#allocation2 + $0x4] sm:$0xf]
    %v46 = vld [vmem:[#allocation5] sm:$0xf]
    %v47 = vld [vmem:[#allocation5 + $0x4] sm:$0xf]
    %v48 = vld [vmem:[#allocation5 + $0x8] sm:$0xf]
    %v49 = vld [vmem:[#allocation5 + $0xc] sm:$0xf]
    %v50 = vld [vmem:[%s2] sm:$0x1]
    %v52 = vlaneseq
    %v53 = vshrl.u32 %v52, 7
    %v54 = vsub.s32 0, %v53
    %v55 = vrot.slane %v50, %v54
    %v59 = vunpack.c.l.b16 %v44
    %v60 = vunpack.c.l.b16 %v45
    %v61 = vpack.c.b16 %v60, %v59
    %v66 = vunpack.c.l.b16 %v46
    %v67 = vunpack.c.l.b16 %v47
    %v68 = vunpack.c.l.b16 %v48
    %v69 = vunpack.c.l.b16 %v49
    %v70 = vpack.c.b16 %v67, %v66
    %v71 = vpack.c.b16 %v69, %v68
    %vm74 = vcmask 261120
    %v76 = vsel %vm74, %v61, 0
    %78 = vmatprep.subr.bf16.mxu0 0
    %79 = vmatpush1.bf16.msra.mxu0 %v70
    %80 = vmatprep.subr.bf16.mxu0 0
    %81 = vmatpush1.bf16.msra.mxu0 %v71
    %82 = vmatprep.subr.bf16.mxu0 0
    %83 = vmatpush1.bf16.msra.mxu0 0
    %84 = vmatprep.subr.bf16.mxu0 0
    %85 = vmatpush1.bf16.msra.mxu0 0
    %86 = vmatprep.subr.bf16.mxu0 0
    %87 = vmatpush1.bf16.msra.mxu0 0
    %88 = vmatprep.subr.bf16.mxu0 0
    %89 = vmatpush1.bf16.msra.mxu0 0
    %90 = vmatprep.subr.bf16.mxu0 0
    %91 = vmatpush1.bf16.msra.mxu0 0
    %92 = vmatprep.subr.bf16.mxu0 0
    %93 = vmatpush1.bf16.msra.mxu0 0
    %94 = vmatprep.subr.bf16.mxu0 0
    %95 = vmatpush1.bf16.msra.mxu0 0
    %96 = vmatprep.subr.bf16.mxu0 0
    %97 = vmatpush1.bf16.msra.mxu0 0
    %98 = vmatprep.subr.bf16.mxu0 0
    %99 = vmatpush1.bf16.msra.mxu0 0
    %100 = vmatprep.subr.bf16.mxu0 0
    %101 = vmatpush1.bf16.msra.mxu0 0
    %102 = vmatprep.subr.bf16.mxu0 0
    %103 = vmatpush1.bf16.msra.mxu0 0
    %104 = vmatprep.subr.bf16.mxu0 0
    %105 = vmatpush1.bf16.msra.mxu0 0
    %106 = vmatprep.subr.bf16.mxu0 0
    %107 = vmatpush1.bf16.msra.mxu0 0
    %108 = vmatprep.subr.bf16.mxu0 0
    %109 = vmatpush1.bf16.msra.mxu0 0
    %110 = vmatprep.mubr.bf16.mxu0 0
    %111 = vmatmul.mubr.bf16.gmra.mrb[0].mxu0 %v76
    %v112 = vpop.f32.mrb[0].mxu0
    %v113 = vadd.f32 %v55, %v112
    %v114 = vpop.f32.mrb[0].mxu0
    %v115 = vpop.f32.mrb[0].mxu0
    %v116 = vadd.f32 %v55, %v115
    %v117 = vpop.f32.mrb[0].mxu0
    %118 = vdwg.mxu0
    %119 = vst.msk [vmem:[#allocation7] sm:$0xff] %vm74, %v113
    %120 = vst.msk [vmem:[#allocation7 + $0x8] sm:$0xff] %vm74, %v116
    // Predicated region
    $region22: #{tpu_custom_call.1} parent=1 // pred_check
      _
    $region23: #{tpu_custom_call.1} parent=1 // pred_check_branch
      %122 = sbr.rel (0) target = $region25
    $region24: #{tpu_custom_call.1} parent=1 // pred_region
      %s124 = ssub.s32 256, 256
      %125 = vsyncadd [#allocation4], %s124
      %s126 = sshll.u32 [#allocation7], 4
      %s127 = int_to_ptr.vmem [resolvable:$true] %s126
      %132 = dma.vmem_to_hbm [thread:$0]  %s127, 256, %s3, [#allocation4], 128, 128, 8
    $region25: #{tpu_custom_call.1} parent=1 // pred_fallthru
      _
    // Predicated region
    $region26: #{tpu_custom_call.1} parent=1 // pred_check
      _
    $region27: #{tpu_custom_call.1} parent=1 // pred_check_branch
      %134 = sbr.rel (0) target = $region29
    $region28: #{tpu_custom_call.1} parent=1 // pred_region
      %135 = dma.done [#allocation4], 256
    $region29: #{tpu_custom_call.1} parent=1 // pred_fallthru
      _
    %136 = vsyncpa [#allocation3], 1
    %137 = vsyncpa [#allocation6], 1
    %138 = vsyncpa [#allocation4], 1

</llo_original>
